<compile_context>
chip_gen: v7x
topology: tpu7x:2x2x1
jax: 0.10.0
libtpu: 0.0.40
codegen_flags: <defaults>
</compile_context>

<pallas_src>
import functools

import jax
import jax.numpy as jnp
from jax.experimental import pallas as pl
from jax.experimental.pallas import tpu as pltpu

QUANT_MIN = -128
QUANT_MAX = 127
GAMMA, ZETA = -0.1, 1.1

_LANE = 128
_MAX_COLS = 1024              # lane-dense last dim (multiple of 128)
# Per-mode row-tile targets (block = block_rows x 1024 f32):
#   nearest: 2 streams -> 4 MiB tiles, 16 MiB double-buffered
#   sigmoid: 3 streams -> 2 MiB tiles, 12 MiB double-buffered
_TARGET_ROWS_NEAREST = 1024
_TARGET_ROWS_SIGMOID = 512
_VMEM_LIMIT_BYTES = 32 * 1024 * 1024


# ------------------------------- kernels ------------------------------------

def _nearest_kernel(qp_ref, x_ref, o_ref):
    """torch.fake_quantize_per_tensor_affine on one tile (per-tensor scale).

    qp_ref (SMEM, f32[3]) = [inv_scale, scale, zero_point].
    """
    # Scalar SMEM reads first, before any heavy tile work.
    inv_scale = qp_ref[0]
    scale = qp_ref[1]
    zp = qp_ref[2]

    x = x_ref[...]
    q = jnp.round(x * inv_scale) + zp           # round-half-to-even (nearbyint)
    q = jnp.clip(q, float(QUANT_MIN), float(QUANT_MAX))
    o_ref[...] = ((q - zp) * scale).astype(o_ref.dtype)


def _sigmoid_kernel(qp_ref, x_ref, a_ref, o_ref, *, soft):
    """AdaRound floor(x/s) + (soft|hard) sigmoid offset on one tile.

    zero_point is intentionally unused on this path (matches the torch module,
    which only adds zp in the nearest/fake_quant branch).
    """
    inv_scale = qp_ref[0]
    scale = qp_ref[1]

    x_floor = jnp.floor(x_ref[...] * inv_scale)
    alpha = a_ref[...]
    if soft:
        # sigmoid(a) = 0.5 * (tanh(a/2) + 1): EUP tanh, no vector divide.
        sig = 0.5 * (jnp.tanh(alpha * 0.5) + 1.0)
        h = jnp.clip(sig * (ZETA - GAMMA) + GAMMA, 0.0, 1.0)
    else:
        h = (alpha >= 0.0).astype(x_floor.dtype)

    q = jnp.clip(x_floor + h, float(QUANT_MIN), float(QUANT_MAX))
    o_ref[...] = (q * scale).astype(o_ref.dtype)


# ------------------------------- layout -------------------------------------

def _round_up(v, m):
    return (v + m - 1) // m * m


def _cdiv(a, b):
    return -(-a // b)


def _choose_cols(total):
    """Largest multiple of 128 (<=1024) dividing `total` -> pad-free packing."""
    c = _MAX_COLS
    while c >= _LANE:
        if total % c == 0:
            return c, False
        c -= _LANE
    # No exact factor: fall back to a padded packing (rare).
    return min(_MAX_COLS, _round_up(total, _LANE)), True


def _plan_layout(total, target_rows):
    """Pick a lane-dense 2-D packing + row tiling for a flat elementwise op."""
    cols, needs_pad = _choose_cols(total)
    rows = _cdiv(total, cols)
    if rows <= target_rows:
        block_rows = rows                       # full-dim block is always legal
        # Give the ("parallel",) axis >= 2 steps so v7x's 2 TensorCores both
        # pull from HBM (no-op on 1-TC v5e/v6e; skipped for tiny tensors).
        if rows >= 16:
            half = _round_up(_cdiv(rows, 2), 8)
            if half < rows:
                block_rows = half
    else:
        block_rows = target_rows                # multiple of 8 by construction
    grid_steps = _cdiv(rows, block_rows)        # partial last block is masked
    return rows, cols, block_rows, grid_steps, needs_pad


def _pack(arr, rows, cols, needs_pad):
    flat = arr.reshape(-1)
    if needs_pad:
        flat = jnp.pad(flat, (0, rows * cols - flat.shape[0]))
    return flat.reshape(rows, cols)


# ------------------------------- wrapper -------------------------------------

def adaround_forward(x, alpha=None, scale=1.0, zero_point=0.0, *,
                     fake_quant_enabled=1,
                     soft_sigmoid_enabled=0,
                     hard_sigmoid_enabled=0):
    """AdaRound.forward. Mode flags are trace-time Python ints (module buffers)."""
    if not fake_quant_enabled:
        return x                                       # enable_floating_point()

    use_sigmoid = bool(soft_sigmoid_enabled) or bool(hard_sigmoid_enabled)
    total = int(x.size)
    target_rows = _TARGET_ROWS_SIGMOID if use_sigmoid else _TARGET_ROWS_NEAREST
    rows, cols, block_rows, grid_steps, needs_pad = _plan_layout(total, target_rows)

    scale_f = jnp.asarray(scale, jnp.float32)
    inv_scale = jnp.float32(1.0) / scale_f             # hoisted scalar reciprocal
    zp_f = jnp.asarray(zero_point, jnp.float32)
    qparams = jnp.stack([inv_scale, scale_f, zp_f])    # f32[3] -> SMEM

    data_spec = pl.BlockSpec((block_rows, cols), lambda i: (i, 0))
    smem_spec = pl.BlockSpec(memory_space=pltpu.MemorySpace.SMEM)
    compiler_params = pltpu.CompilerParams(
        dimension_semantics=("parallel",),
        vmem_limit_bytes=_VMEM_LIMIT_BYTES)
    out_shape = jax.ShapeDtypeStruct((rows, cols), x.dtype)

    padded = rows * cols
    n_stream = 3 if use_sigmoid else 2                 # arrays hitting HBM
    cost = pl.CostEstimate(
        flops=8 * padded,
        transcendentals=padded if soft_sigmoid_enabled else 0,
        bytes_accessed=n_stream * padded * x.dtype.itemsize)

    if use_sigmoid:
        assert alpha is not None, "sigmoid modes need alpha (enable_sigmoid_quant)"
        kernel = functools.partial(_sigmoid_kernel,
                                   soft=bool(soft_sigmoid_enabled))
        out2 = pl.pallas_call(
            kernel,
            out_shape=out_shape,
            grid=(grid_steps,),
            in_specs=[smem_spec, data_spec, data_spec],
            out_specs=data_spec,
            compiler_params=compiler_params,
            cost_estimate=cost,
        )(qparams,
          _pack(x, rows, cols, needs_pad),
          _pack(alpha, rows, cols, needs_pad))
    else:
        out2 = pl.pallas_call(
            _nearest_kernel,
            out_shape=out_shape,
            grid=(grid_steps,),
            in_specs=[smem_spec, data_spec],
            out_specs=data_spec,
            compiler_params=compiler_params,
            cost_estimate=cost,
        )(qparams, _pack(x, rows, cols, needs_pad))

    if needs_pad:
        return out2.reshape(-1)[:total].reshape(x.shape)
    return out2.reshape(x.shape)                        # free reshape, no copy


# ----------------------- plain-JAX glue / reference -------------------------

def symmetric_observer_qparams(x):
    """Per-tensor symmetric min/max observer -> (scale, zero_point)."""
    max_abs = jnp.max(jnp.abs(x))
    scale = jnp.maximum(max_abs / ((QUANT_MAX - QUANT_MIN) / 2.0),
                        jnp.float32(1e-8))
    return scale.astype(jnp.float32), jnp.float32(0.0)


def init_alpha(x, scale):
    """enable_sigmoid_quant() alpha initialization (deterministic from x)."""
    x_over_s = x / scale
    rest = x_over_s - jnp.floor(x_over_s)
    return -jnp.log((ZETA - GAMMA) / (rest - GAMMA) - 1.0)


def reference_forward(x, alpha, scale, zp, *, fq=1, soft=0, hard=0):
    """Plain-JAX port of AdaRound.forward (same inv-scale formulation)."""
    if fq == 0:
        return x
    inv_scale = jnp.float32(1.0) / jnp.asarray(scale, jnp.float32)
    if soft == 1 or hard == 1:
        x_floor = jnp.floor(x * inv_scale)
        if soft == 1:
            h = jnp.clip(jax.nn.sigmoid(alpha) * (ZETA - GAMMA) + GAMMA, 0.0, 1.0)
        else:
            h = (alpha >= 0.0).astype(x.dtype)
        return jnp.clip(x_floor + h, QUANT_MIN, QUANT_MAX) * scale
    q = jnp.clip(jnp.round(x * inv_scale) + zp, QUANT_MIN, QUANT_MAX)
    return (q - zp) * scale


if __name__ == "__main__":
    key = jax.random.PRNGKey(0)

    modes = [
        dict(fake_quant_enabled=1, soft_sigmoid_enabled=0, hard_sigmoid_enabled=0),
        dict(fake_quant_enabled=1, soft_sigmoid_enabled=1, hard_sigmoid_enabled=0),
        dict(fake_quant_enabled=1, soft_sigmoid_enabled=0, hard_sigmoid_enabled=1),
        dict(fake_quant_enabled=0, soft_sigmoid_enabled=0, hard_sigmoid_enabled=0),
    ]

    # Primary NCHW shape (single block, pad-free) plus a second small shape
    # that exercises the multi-step grid with a masked partial last block.
    for shape in [(2, 4, 16, 16), (4, 8, 24, 24)]:
        k0, key = jax.random.split(key)
        x = jax.random.normal(k0, shape, dtype=jnp.float32)

        # Observer pass (per_tensor_symmetric) -> scale / zero_point buffers.
        scale, zero_point = symmetric_observer_qparams(x)
        # enable_sigmoid_quant(): alpha Parameter initialized from the cached X.
        alpha = init_alpha(x, scale)

        for m in modes:
            out = adaround_forward(x, alpha, scale, zero_point, **m)
            out = jax.block_until_ready(out)
            ref = reference_forward(x, alpha, scale, zero_point,
                                    fq=m["fake_quant_enabled"],
                                    soft=m["soft_sigmoid_enabled"],
                                    hard=m["hard_sigmoid_enabled"])
            assert out.shape == x.shape and out.dtype == x.dtype
            assert jnp.allclose(out, ref, atol=1e-5, rtol=1e-5), (shape, m)

    print("KERNEL_OK")
</pallas_src>

<mosaic_0001>
module attributes {stable_mosaic.version = 11 : i64} {
  func.func @_nearest_kernel(%arg0: i32, %arg1: memref<3xf32, #tpu.memory_space<smem>>, %arg2: memref<2x1024xf32, #tpu.memory_space<vmem>>, %arg3: memref<2x1024xf32, #tpu.memory_space<vmem>>) attributes {dimension_semantics = [#tpu.dimension_semantics<parallel>], iteration_bounds = array<i64: 1>, scalar_prefetch = 0 : i64, scratch_operands = 0 : i64, tpu.core_type = #tpu.core_type<tc>, window_params = [{transform_indices = @transform_0, window_bounds = array<i64: 3>}, {transform_indices = @transform_1, window_bounds = array<i64: 2, 1024>}, {transform_indices = @transform_2, window_bounds = array<i64: 2, 1024>}]} {
    %c0 = arith.constant 0 : index
    %0 = memref.load %arg1[%c0] : memref<3xf32, #tpu.memory_space<smem>>
    %c1 = arith.constant 1 : index
    %1 = memref.load %arg1[%c1] : memref<3xf32, #tpu.memory_space<smem>>
    %c2 = arith.constant 2 : index
    %2 = memref.load %arg1[%c2] : memref<3xf32, #tpu.memory_space<smem>>
    %c0_0 = arith.constant 0 : index
    %c0_1 = arith.constant 0 : index
    %3 = vector.load %arg2[%c0_0, %c0_1] : memref<2x1024xf32, #tpu.memory_space<vmem>>, vector<2x1024xf32>
    %4 = vector.broadcast %0 : f32 to vector<2x1024xf32>
    %5 = arith.mulf %3, %4 : vector<2x1024xf32>
    %6 = math.roundeven %5 : vector<2x1024xf32>
    %7 = vector.broadcast %2 : f32 to vector<2x1024xf32>
    %8 = arith.addf %6, %7 : vector<2x1024xf32>
    %cst = arith.constant -1.280000e+02 : f32
    %cst_2 = arith.constant 1.270000e+02 : f32
    %9 = vector.broadcast %cst : f32 to vector<2x1024xf32>
    %10 = arith.maximumf %9, %8 : vector<2x1024xf32>
    %11 = vector.broadcast %cst_2 : f32 to vector<2x1024xf32>
    %12 = arith.minimumf %11, %10 : vector<2x1024xf32>
    %13 = vector.broadcast %2 : f32 to vector<2x1024xf32>
    %14 = arith.subf %12, %13 : vector<2x1024xf32>
    %15 = vector.broadcast %1 : f32 to vector<2x1024xf32>
    %16 = arith.mulf %14, %15 : vector<2x1024xf32>
    %c0_3 = arith.constant 0 : index
    %c0_4 = arith.constant 0 : index
    %17 = vector.load %arg3[%c0_3, %c0_4] : memref<2x1024xf32, #tpu.memory_space<vmem>>, vector<2x1024xf32>
    tpu.vector_store %arg3[%c0_3, %c0_4], %16 {strides = array<i32>} : memref<2x1024xf32, #tpu.memory_space<vmem>>, vector<2x1024xf32>,
    return
  }
  func.func @transform_0(%arg0: i32) -> i32 {
    %c0_i32 = arith.constant 0 : i32
    %c0_i32_0 = arith.constant 0 : i32
    return %c0_i32 : i32
  }
  func.func @transform_1(%arg0: i32) -> (i32, i32) {
    %c0_i32 = arith.constant 0 : i32
    %c0_i32_0 = arith.constant 0 : i32
    return %arg0, %c0_i32 : i32, i32
  }
  func.func @transform_2(%arg0: i32) -> (i32, i32) {
    %c0_i32 = arith.constant 0 : i32
    %c0_i32_0 = arith.constant 0 : i32
    return %arg0, %c0_i32 : i32, i32
  }
}

</mosaic_0001>

<llo_original>
// kernel: tpu_custom_call.1
$region0: #{tpu_custom_call.1}
  #allocation0 [shape = 'u32[]', space=smem, size = 0x4, offset = 0x4, fixed_abs, tag = 'smem constant byte address 0x4 - core index']
  #allocation1 [shape = 'u32[144,128]{1,0:T(1,128)}', space=vmem, size = 0x12000, scoped, tag = 'internal scratch']
  %s0 = inlined_call_operand.hbm [shape: f32[3], index: 0, kind: input, shape index: {}]
  %s1 = inlined_call_operand.hbm [shape: f32[2,1024], index: 1, kind: input, shape index: {}]
  %s2 = inlined_call_operand.hbm [shape: f32[2,1024], index: 2, kind: output, shape index: {}]
  %s3 = sld [smem:[#allocation0]]
  $region26: #{tpu_custom_call.1} parent=0
    _
  %s5 = ssub.s32 1, %s3
  %s6 = scalar_select 0, %s5, %s3
  $region1: #{tpu_custom_call.1} parent=0
    #allocation2 [shape = 'u8[512]{0}', space=smem, size = 0x200, scoped, tag = 'input window, operand 0, single buffered']
    #allocation3 [shape = 's32[1]{0}', space=sflag, size = 0x4, scoped, tag = 'scoped memory for tpu_custom_call.1']
    #allocation4 [shape = 's32[1]{0}', space=sflag, size = 0x4, scoped, tag = 'scoped memory for tpu_custom_call.1']
    #allocation5 [shape = 's32[1]{0}', space=sflag, size = 0x4, scoped, tag = 'scoped memory for tpu_custom_call.1']
    #allocation6 [shape = 'u8[8192]{0}', space=vmem, size = 0x2000, scoped, tag = 'input window, operand 1, single buffered']
    #allocation7 [shape = 'u8[8192]{0}', space=vmem, size = 0x2000, scoped, tag = 'output window, operand 0, single buffered']
    %7 = vsyncpa [#allocation5], 0
    %8 = vsyncpa [#allocation3], 0
    %9 = vsyncpa [#allocation4], 0
    // Predicated region
    $region2: #{tpu_custom_call.1} parent=1 // pred_check
      _
    $region3: #{tpu_custom_call.1} parent=1 // pred_check_branch
      %11 = sbr.rel (0) target = $region5
    $region4: #{tpu_custom_call.1} parent=1 // pred_region
      %s13 = ssub.s32 16, 16
      %14 = vsyncadd [#allocation5], %s13
      %17 = dma.hbm_to_smem %s0, 16, [#allocation2], [#allocation5]
    $region5: #{tpu_custom_call.1} parent=1 // pred_fallthru
      _
    // Predicated region
    $region6: #{tpu_custom_call.1} parent=1 // pred_check
      _
    $region7: #{tpu_custom_call.1} parent=1 // pred_check_branch
      %19 = sbr.rel (0) target = $region9
    $region8: #{tpu_custom_call.1} parent=1 // pred_region
      %s21 = ssub.s32 256, 256
      %22 = vsyncadd [#allocation3], %s21
      %s24 = sshll.u32 [#allocation6], 4
      %s25 = int_to_ptr.vmem [resolvable:$true] %s24
      %27 = dma.hbm_to_vmem [thread:$0]  %s1, 256, %s25, [#allocation3]
    $region9: #{tpu_custom_call.1} parent=1 // pred_fallthru
      _
    // Predicated region
    $region10: #{tpu_custom_call.1} parent=1 // pred_check
      _
    $region11: #{tpu_custom_call.1} parent=1 // pred_check_branch
      %29 = sbr.rel (0) target = $region13
    $region12: #{tpu_custom_call.1} parent=1 // pred_region
      %30 = dma.done [#allocation5], 16
    $region13: #{tpu_custom_call.1} parent=1 // pred_fallthru
      _
    // Predicated region
    $region14: #{tpu_custom_call.1} parent=1 // pred_check
      _
    $region15: #{tpu_custom_call.1} parent=1 // pred_check_branch
      %32 = sbr.rel (0) target = $region17
    $region16: #{tpu_custom_call.1} parent=1 // pred_region
      %33 = dma.done [#allocation3], 256
    $region17: #{tpu_custom_call.1} parent=1 // pred_fallthru
      _
    %34 = sfence
    %s35 = sld [smem:[#allocation2]]
    %s36 = sld [smem:[#allocation2 + $0x1]]
    %s37 = sld [smem:[#allocation2 + $0x2]]
    %v38 = vld [vmem:[#allocation6] sm:$0xff]
    %v39 = vld [vmem:[#allocation6 + $0x8] sm:$0xff]
    %v40 = vstv %s35
    %v41 = vmul.f32 %v38, %v40
    %v42 = vmul.f32 %v39, %v40
    %v43 = vround.ne.pseudo %v41
    %v44 = vround.ne.pseudo %v42
    %v45 = vstv %s37
    %v46 = vadd.f32 %v43, %v45
    %v47 = vadd.f32 %v44, %v45
    %v48 = vmax.f32 %v46, -128.0
    %v49 = vmax.f32 %v47, -128.0
    %v50 = vmin.f32 %v48, 127.0
    %v51 = vmin.f32 %v49, 127.0
    %v52 = vsub.f32 %v50, %v45
    %v53 = vsub.f32 %v51, %v45
    %v54 = vstv %s36
    %v55 = vmul.f32 %v52, %v54
    %v56 = vmul.f32 %v53, %v54
    %57 = vst [vmem:[#allocation7] sm:$0xff] %v55
    %58 = vst [vmem:[#allocation7 + $0x8] sm:$0xff] %v56
    // Predicated region
    $region18: #{tpu_custom_call.1} parent=1 // pred_check
      _
    $region19: #{tpu_custom_call.1} parent=1 // pred_check_branch
      %60 = sbr.rel (0) target = $region21
    $region20: #{tpu_custom_call.1} parent=1 // pred_region
      %s62 = ssub.s32 256, 256
      %63 = vsyncadd [#allocation4], %s62
      %s65 = sshll.u32 [#allocation7], 4
      %s66 = int_to_ptr.vmem [resolvable:$true] %s65
      %68 = dma.vmem_to_hbm [thread:$0]  %s66, 256, %s2, [#allocation4]
    $region21: #{tpu_custom_call.1} parent=1 // pred_fallthru
      _
    // Predicated region
    $region22: #{tpu_custom_call.1} parent=1 // pred_check
      _
    $region23: #{tpu_custom_call.1} parent=1 // pred_check_branch
      %70 = sbr.rel (0) target = $region25
    $region24: #{tpu_custom_call.1} parent=1 // pred_region
      %71 = dma.done [#allocation4], 256
    $region25: #{tpu_custom_call.1} parent=1 // pred_fallthru
      _
    %72 = vsyncpa [#allocation3], 1
    %73 = vsyncpa [#allocation4], 1
    %74 = vsyncpa [#allocation5], 1

</llo_original>
